<compile_context>
chip_gen: v6e
topology: v6e:2x2x1
jax: 0.10.0
libtpu: 0.0.40
codegen_flags: <defaults>
</compile_context>

<pallas_src>
import jax
import jax.numpy as jnp
from jax.experimental import pallas as pl
from jax.experimental.pallas import tpu as pltpu


def _perturb_add_kernel(x_ref, p_ref, o_ref):
    # x_ref: (TN, TR, L) image chunk; p_ref: (TR, L) perturbation chunk,
    # broadcast over the leading TN dim. Pure streaming add.
    o_ref[...] = (x_ref[...] + p_ref[...]).astype(o_ref.dtype)


def _cdiv(a, b):
    return -(-a // b)


def _largest_lane_divisor(total, cap_elems):
    """Largest divisor of `total` that is a multiple of 128 and <= cap_elems.

    Requires total % 128 == 0 (so at least 128 always qualifies)."""
    q = total // 128
    k_max = min(q, max(1, cap_elems // 128))
    for k in range(k_max, 0, -1):
        if q % k == 0:
            return 128 * k
    return 128


def _vmem_capacity_bytes():
    """Physical per-core VMEM; conservative 64 MiB fallback (v7x) if unknown."""
    try:
        info = pltpu.get_tpu_info()
        cap = getattr(info, "vmem_capacity_bytes", None)
        if cap:
            return int(cap)
    except Exception:
        pass
    return 64 << 20


def universal_perturbations_forward(x, weights, *, output_norm, attack,
                                    n_perturbation_height, n_perturbation_width,
                                    donate_x=False):
    """Pallas forward. x: (N, C, H, W), weights: (C, ph, pw)."""
    N, C, H, W = x.shape
    if attack == 'full':
        ph, pw = H, W
    elif attack == 'tile':
        ph, pw = n_perturbation_height, n_perturbation_width
        if H % ph != 0:
            raise ValueError('Tile will not fit into image height: {} % {} != 0'.format(H, ph))
        if W % pw != 0:
            raise ValueError('Tile will not fit into image width: {} % {} != 0'.format(W, pw))
    else:
        raise ValueError('Invalid attack: {}'.format(attack))
    assert weights.shape == (C, ph, pw)

    # --- Hoisted (once per call, amortized over the batch): l-inf projection + tiling.
    pert = jnp.clip(weights, -float(output_norm), float(output_norm))
    if attack == 'tile':
        pert = jnp.tile(pert, (1, H // ph, W // pw))          # (C, H, W)
    pert = pert.astype(x.dtype)
    # TODO(synk): for very small batches the fully tiled pert could instead be kept
    # as the (C, ph, pw) tile and expanded via the index_map to save ~C*H*W of HBM
    # traffic; skipped since the benefit vanishes for realistic batch sizes.

    itemsize = jnp.dtype(x.dtype).itemsize
    sub_mult = {1: 32, 2: 16, 4: 8}.get(itemsize, 8)          # dtype-aware sublane multiple

    # --- Lane-dense flattened view: (N, R, L) with L a multiple of 128 when possible.
    total = C * H * W
    lane_cap_bytes = 128 << 10
    lane_cap_elems = max(128, lane_cap_bytes // itemsize)
    if total % 128 == 0:
        L = _largest_lane_divisor(total, lane_cap_elems)      # unmasked stores
    elif total * itemsize <= lane_cap_bytes:
        L = total                                             # full extent; tail-masked only
    else:
        L = W                                                 # rare fallback; still legal
    R = total // L

    # --- Generation-aware block / VMEM budget.
    vmem_cap = _vmem_capacity_bytes()
    target_bytes = (8 << 20) if vmem_cap >= (96 << 20) else (6 << 20)
    budget_cap = max(32 << 20, (vmem_cap * 4) // 5)           # ~80% of physical VMEM

    # Row tile (second-to-last block dim): multiple of sub_mult, or the full extent R.
    row_bytes = L * itemsize
    rows_per_block = max(1, target_bytes // row_bytes)
    if rows_per_block >= R:
        tr = R
    elif rows_per_block >= sub_mult:
        tr = (rows_per_block // sub_mult) * sub_mult
    else:
        tr = min(R, sub_mult)
    n_row_blocks = _cdiv(R, tr)

    # Batch tile: pack several images per block for small images (amortizes the
    # ~0.35 us per-step overhead) while the pert chunk is shared across them.
    block_rows_bytes = tr * row_bytes
    tn = int(min(N, max(1, target_bytes // block_rows_bytes)))

    # Guarantee enough grid steps for double-buffering overlap + megacore sharding.
    MIN_STEPS = 4
    while tn > 1 and n_row_blocks * _cdiv(N, tn) < MIN_STEPS:
        tn = max(1, tn // 2)
    if (n_row_blocks * _cdiv(N, tn) < MIN_STEPS
            and tr > sub_mult and R > sub_mult):
        want = _cdiv(MIN_STEPS, _cdiv(N, tn))
        tr = min(tr, max(sub_mult, ((R // want) // sub_mult) * sub_mult))
        n_row_blocks = _cdiv(R, tr)
    n_batch_blocks = _cdiv(N, tn)

    x3 = x.reshape(N, R, L)                                   # contiguous (free) reshape
    pert2 = pert.reshape(R, L)

    # VMEM budget: x, out, pert blocks, each double-buffered by the auto-pipeline.
    x_block_bytes = tn * tr * L * itemsize
    p_block_bytes = tr * L * itemsize
    vmem_needed = 2 * (2 * x_block_bytes + p_block_bytes)
    vmem_limit = int(min(max(vmem_needed + (4 << 20), 32 << 20), budget_cap))

    grid_spec = pltpu.PrefetchScalarGridSpec(
        num_scalar_prefetch=0,
        grid=(n_row_blocks, n_batch_blocks),                  # batch blocks innermost:
        in_specs=[                                            #   pert tile reused across them
            pl.BlockSpec((tn, tr, L), lambda r, n: (n, r, 0)),  # image chunk
            pl.BlockSpec((tr, L), lambda r, n: (r, 0)),         # perturbation chunk
        ],
        out_specs=pl.BlockSpec((tn, tr, L), lambda r, n: (n, r, 0)),
    )

    out3 = pl.pallas_call(
        _perturb_add_kernel,
        out_shape=jax.ShapeDtypeStruct((N, R, L), x.dtype),
        grid_spec=grid_spec,
        compiler_params=pltpu.CompilerParams(
            dimension_semantics=("parallel", "parallel"),
            vmem_limit_bytes=vmem_limit),
        # In-place add only when the caller really donates x (same shape/dtype).
        input_output_aliases=({0: 0} if donate_x else {}),
    )(x3, pert2)

    return out3.reshape(N, C, H, W)


def _reference(x, weights, *, output_norm, attack, repeat_h, repeat_w):
    w = jnp.clip(weights, -output_norm, output_norm)
    if attack == 'tile':
        w = jnp.tile(w, (1, repeat_h, repeat_w))
    return x + w[None]


if __name__ == "__main__":
    # Small shapes consistent with the module's forward: N x C x H x W image.
    N, C, H, W = 2, 4, 16, 16
    ph, pw = 8, 8                  # 'tile' attack: 2x2 repeats cover the image
    output_norm = 0.1

    key = jax.random.PRNGKey(0)
    kx, kw = jax.random.split(key)
    x = jax.random.normal(kx, (N, C, H, W), dtype=jnp.float32)
    # Module __init__ uses zeros; use deterministic random values instead so the
    # l-inf clamp and the add are actually exercised.
    weights = 0.5 * jax.random.normal(kw, (C, ph, pw), dtype=jnp.float32)

    out = universal_perturbations_forward(
        x, weights,
        output_norm=output_norm, attack='tile',
        n_perturbation_height=ph, n_perturbation_width=pw)
    out = jax.block_until_ready(out)

    ref = _reference(x, weights, output_norm=output_norm, attack='tile',
                     repeat_h=H // ph, repeat_w=W // pw)
    assert out.shape == (N, C, H, W)
    assert out.dtype == jnp.float32
    assert jnp.allclose(out, ref, atol=1e-6, rtol=1e-6)

    # Also exercise the 'full' attack path (perturbation covers the whole image).
    w_full = 0.5 * jax.random.normal(kw, (C, H, W), dtype=jnp.float32)
    out_full = universal_perturbations_forward(
        x, w_full, output_norm=output_norm, attack='full',
        n_perturbation_height=H, n_perturbation_width=W)
    out_full = jax.block_until_ready(out_full)
    ref_full = _reference(x, w_full, output_norm=output_norm, attack='full',
                          repeat_h=1, repeat_w=1)
    assert jnp.allclose(out_full, ref_full, atol=1e-6, rtol=1e-6)

    print("KERNEL_OK")
</pallas_src>

<mosaic_0001>
module attributes {stable_mosaic.version = 11 : i64} {
  func.func @_perturb_add_kernel(%arg0: i32, %arg1: i32, %arg2: memref<1x1x1024xf32, #tpu.memory_space<vmem>>, %arg3: memref<1x1024xf32, #tpu.memory_space<vmem>>, %arg4: memref<1x1x1024xf32, #tpu.memory_space<vmem>>) attributes {dimension_semantics = [#tpu.dimension_semantics<parallel>, #tpu.dimension_semantics<parallel>], iteration_bounds = array<i64: 1, 2>, scalar_prefetch = 0 : i64, scratch_operands = 0 : i64, tpu.core_type = #tpu.core_type<tc>, window_params = [{transform_indices = @transform_0, window_bounds = array<i64: 1, 1, 1024>}, {transform_indices = @transform_1, window_bounds = array<i64: 1, 1024>}, {transform_indices = @transform_2, window_bounds = array<i64: 1, 1, 1024>}]} {
    %c0 = arith.constant 0 : index
    %c0_0 = arith.constant 0 : index
    %c0_1 = arith.constant 0 : index
    %0 = vector.load %arg2[%c0, %c0_0, %c0_1] : memref<1x1x1024xf32, #tpu.memory_space<vmem>>, vector<1x1x1024xf32>
    %c0_2 = arith.constant 0 : index
    %c0_3 = arith.constant 0 : index
    %1 = vector.load %arg3[%c0_2, %c0_3] : memref<1x1024xf32, #tpu.memory_space<vmem>>, vector<1x1024xf32>
    %2 = vector.shape_cast %1 : vector<1x1024xf32> to vector<1x1x1024xf32>
    %3 = arith.addf %0, %2 : vector<1x1x1024xf32>
    %c0_4 = arith.constant 0 : index
    %c0_5 = arith.constant 0 : index
    %c0_6 = arith.constant 0 : index
    %4 = vector.load %arg4[%c0_4, %c0_5, %c0_6] : memref<1x1x1024xf32, #tpu.memory_space<vmem>>, vector<1x1x1024xf32>
    tpu.vector_store %arg4[%c0_4, %c0_5, %c0_6], %3 {strides = array<i32>} : memref<1x1x1024xf32, #tpu.memory_space<vmem>>, vector<1x1x1024xf32>,
    return
  }
  func.func @transform_0(%arg0: i32, %arg1: i32) -> (i32, i32, i32) {
    %c0_i32 = arith.constant 0 : i32
    %c0_i32_0 = arith.constant 0 : i32
    return %arg1, %arg0, %c0_i32 : i32, i32, i32
  }
  func.func @transform_1(%arg0: i32, %arg1: i32) -> (i32, i32) {
    %c0_i32 = arith.constant 0 : i32
    %c0_i32_0 = arith.constant 0 : i32
    return %arg0, %c0_i32 : i32, i32
  }
  func.func @transform_2(%arg0: i32, %arg1: i32) -> (i32, i32, i32) {
    %c0_i32 = arith.constant 0 : i32
    %c0_i32_0 = arith.constant 0 : i32
    return %arg1, %arg0, %c0_i32 : i32, i32, i32
  }
}

</mosaic_0001>

<llo_original>
// kernel: tpu_custom_call.1
$region0: #{tpu_custom_call.1}
  #allocation0 [shape = 'u32[]', space=smem, size = 0x4, offset = 0x4, fixed_abs, tag = 'smem constant byte address 0x4 - core index']
  #allocation1 [shape = 'u32[144,128]{1,0:T(1,128)}', space=vmem, size = 0x12000, scoped, tag = 'internal scratch']
  %s0 = inlined_call_operand.hbm [shape: f32[2,1,1024], index: 0, kind: input, shape index: {}]
  %s1 = inlined_call_operand.hbm [shape: f32[1,1024], index: 1, kind: input, shape index: {}]
  %s2 = inlined_call_operand.hbm [shape: f32[2,1,1024], index: 2, kind: output, shape index: {}]
  %s3 = sld [smem:[#allocation0]]
  $region49: #{tpu_custom_call.1} parent=0
    _
  %s5 = ssub.s32 1, %s3
  %s6 = scalar_select 0, %s5, %s3
  $region1: #{tpu_custom_call.1} parent=0
    #allocation2 [shape = 'u8[8192]{0}', space=vmem, size = 0x2000, scoped, tag = 'input window, operand 0']
    #allocation3 [shape = 's32[2]{0}', space=sflag, size = 0x8, scoped, tag = 'scoped memory for tpu_custom_call.1']
    #allocation4 [shape = 's32[2]{0}', space=sflag, size = 0x8, scoped, tag = 'scoped memory for tpu_custom_call.1']
    #allocation5 [shape = 'u8[4096]{0}', space=vmem, size = 0x1000, scoped, tag = 'input window, operand 1, single buffered']
    #allocation6 [shape = 's32[1]{0}', space=sflag, size = 0x4, scoped, tag = 'scoped memory for tpu_custom_call.1']
    #allocation7 [shape = 'u8[8192]{0}', space=vmem, size = 0x2000, scoped, tag = 'output window, operand 0']
    %7 = vsyncpa [#allocation3], 0
    %s8 = scalar_lea.sflag [#allocation3], 1
    %9 = vsyncpa %s8, 0
    %10 = vsyncpa [#allocation6], 0
    %11 = vsyncpa [#allocation4], 0
    %s12 = scalar_lea.sflag [#allocation4], 1
    %13 = vsyncpa %s12, 0
    loop: start=0, step=1, limit=4
    $region2: #{tpu_custom_call.1} parent=1 // loop_pre_header
      _
    $region3: #{tpu_custom_call.1} parent=1 // loop_header
      %s15 = sphi 0, %s19
      %p16 = scmp.ge.s32.totalorder %s15, 4
      %s22 = sphi 0, %s34
      %s23 = sphi 0, %s30
      %s24 = sphi 0, %s22
      %s25 = sphi 0, %s23
      %s26 = sphi 0, %s24
      %s27 = sphi 0, %s25
      %s39 = sphi 0, %s41
      %s42 = sphi 0, %s39
      %s43 = sphi 0, %s42
      %s59 = sphi 0, %s43
      %s65 = sphi 0, %s67
      %s68 = sphi 0, %s65
      %s69 = sphi 0, %s68
      %s85 = sphi 0, %s69
      %s93 = sphi 0, %s95
      %s96 = sphi 0, %s93
      %s97 = sphi 0, %s96
      %s113 = sphi 0, %s97
    $region4: #{tpu_custom_call.1} parent=1 // loop_header_branch
      %18 = sbr.rel (%p16) target = $region8
    $region5: #{tpu_custom_call.1} parent=1 // loop_body
      %s20 = ssub.s32 %s15, 1
      %s21 = ssub.s32 %s15, 2
      %s28 = sadd.s32 1, %s23
      %p29 = scmp.ge.s32.totalorder %s28, 2
      %s30 = scalar_select %p29, 0, %s28
      %s31 = sadd.s32 1, %s22
      %s32 = scalar_select %p29, %s31, %s22
      %p33 = scmp.ge.s32.totalorder %s32, 1
      %s34 = scalar_select %p33, 0, %s32
      %s35 = ssub.s32 %s23, %s30
      %s36 = ssub.s32 %s22, %s34
      %s37 = sor.u32 %s35, %s36
      %p38 = scmp.eq.s32.totalorder %s37, 0
      %s40 = sadd.s32 %s39, 1
      %s41 = scalar_select %p38, %s39, %s40
      %p44 = pneg %p38
      %p45 = scmp.eq.s32.totalorder %s15, 1
      %p46 = por %p44, %p45
      %p47 = scmp.ne.s32.totalorder %s39, %s42
      %p48 = scmp.eq.s32.totalorder %s15, 0
      %p49 = por %p47, %p48
      %p50 = scmp.ne.s32.totalorder %s39, %s42
      %p51 = scmp.eq.s32.totalorder %s20, 1
      %p52 = por %p50, %p51
      %p53 = scmp.ne.s32.totalorder %s42, %s43
      %p54 = scmp.eq.s32.totalorder %s20, 0
      %p55 = por %p53, %p54
      %p56 = scmp.ne.s32.totalorder %s42, %s43
      %p57 = scmp.eq.s32.totalorder %s21, 1
      %p58 = por %p56, %p57
      %p60 = scmp.ne.s32.totalorder %s43, %s59
      %p61 = scmp.eq.s32.totalorder %s21, 0
      %p62 = por %p60, %p61
      %s63 = ssub.s32 %s22, %s34
      %p64 = scmp.eq.s32.totalorder %s63, 0
      %s66 = sadd.s32 %s65, 1
      %s67 = scalar_select %p64, %s65, %s66
      %p70 = pneg %p64
      %p71 = scmp.eq.s32.totalorder %s15, 1
      %p72 = por %p70, %p71
      %p73 = scmp.ne.s32.totalorder %s65, %s68
      %p74 = scmp.eq.s32.totalorder %s15, 0
      %p75 = por %p73, %p74
      %p76 = scmp.ne.s32.totalorder %s65, %s68
      %p77 = scmp.eq.s32.totalorder %s20, 1
      %p78 = por %p76, %p77
      %p79 = scmp.ne.s32.totalorder %s68, %s69
      %p80 = scmp.eq.s32.totalorder %s20, 0
      %p81 = por %p79, %p80
      %p82 = scmp.ne.s32.totalorder %s68, %s69
      %p83 = scmp.eq.s32.totalorder %s21, 1
      %p84 = por %p82, %p83
      %p86 = scmp.ne.s32.totalorder %s69, %s85
      %p87 = scmp.eq.s32.totalorder %s21, 0
      %p88 = por %p86, %p87
      %s89 = ssub.s32 %s23, %s30
      %s90 = ssub.s32 %s22, %s34
      %s91 = sor.u32 %s89, %s90
      %p92 = scmp.eq.s32.totalorder %s91, 0
      %s94 = sadd.s32 %s93, 1
      %s95 = scalar_select %p92, %s93, %s94
      %p98 = pneg %p92
      %p99 = scmp.eq.s32.totalorder %s15, 1
      %p100 = por %p98, %p99
      %p101 = scmp.ne.s32.totalorder %s93, %s96
      %p102 = scmp.eq.s32.totalorder %s15, 0
      %p103 = por %p101, %p102
      %p104 = scmp.ne.s32.totalorder %s93, %s96
      %p105 = scmp.eq.s32.totalorder %s20, 1
      %p106 = por %p104, %p105
      %p107 = scmp.ne.s32.totalorder %s96, %s97
      %p108 = scmp.eq.s32.totalorder %s20, 0
      %p109 = por %p107, %p108
      %p110 = scmp.ne.s32.totalorder %s96, %s97
      %p111 = scmp.eq.s32.totalorder %s21, 1
      %p112 = por %p110, %p111
      %p114 = scmp.ne.s32.totalorder %s97, %s113
      %p115 = scmp.eq.s32.totalorder %s21, 0
      %p116 = por %p114, %p115
      %p117 = scmp.le.s32.totalorder 1, %s15
      %p118 = scmp.lt.s32.totalorder %s15, 3
      %p119 = pnand %p117, %p118
      %p120 = pneg %p119
      // Predicated region
      $region9: #{tpu_custom_call.1} parent=5 // pred_check
        _
      $region10: #{tpu_custom_call.1} parent=5 // pred_check_branch
        %122 = sbr.rel (%p119) target = $region12
      $region11: #{tpu_custom_call.1} parent=5 // pred_region
        %s123 = ssub.s32 %s15, 1
        // Predicated region
        $region13: #{tpu_custom_call.1} parent=11 // pred_check
          %p124 = pneg %p81
        $region14: #{tpu_custom_call.1} parent=11 // pred_check_branch
          %126 = sbr.rel (%p124) target = $region16
        $region15: #{tpu_custom_call.1} parent=11 // pred_region
          %s128 = ssub.s32 128, 128
          %129 = vsyncadd [#allocation6], %s128
          %s130 = smul.addr %s24, 8
          %s131 = smul.addr %s130, 16
          %s132 = scalar_lea.hbm %s1, %s131
          %s134 = sshll.u32 [#allocation5], 4
          %s135 = int_to_ptr.vmem [resolvable:$true] %s134
          %137 = dma.hbm_to_vmem [thread:$0]  %s132, 128, %s135, [#allocation6]
        $region16: #{tpu_custom_call.1} parent=11 // pred_fallthru
          _
      $region12: #{tpu_custom_call.1} parent=5 // pred_fallthru
        _
      %p138 = scmp.lt.s32.totalorder %s15, 2
      // Predicated region
      $region17: #{tpu_custom_call.1} parent=5 // pred_check
        %p139 = pneg %p138
      $region18: #{tpu_custom_call.1} parent=5 // pred_check_branch
        %141 = sbr.rel (%p139) target = $region20
      $region19: #{tpu_custom_call.1} parent=5 // pred_region
        // Predicated region
        $region21: #{tpu_custom_call.1} parent=19 // pred_check
          %p142 = pneg %p49
        $region22: #{tpu_custom_call.1} parent=19 // pred_check_branch
          %144 = sbr.rel (%p142) target = $region24
        $region23: #{tpu_custom_call.1} parent=19 // pred_region
          %s145 = sand.u32 %s39, 1
          %s146 = scalar_lea.sflag [#allocation3], %s145
          %s147 = sand.u32 %s39, 1
          %s148 = smul.addr %s147, 8
          %s149 = scalar_lea.vmem [#allocation2], %s148
          %s151 = ssub.s32 128, 128
          %152 = vsyncadd %s146, %s151
          %s153 = smul.addr %s22, 8
          %s154 = smul.addr %s23, 8
          %s155 = sadd.s32 %s153, %s154
          %s156 = smul.addr %s155, 16
          %s157 = scalar_lea.hbm %s0, %s156
          %s159 = sshll.u32 %s149, 4
          %s160 = int_to_ptr.vmem [resolvable:$true] %s159
          %162 = dma.hbm_to_vmem [thread:$0]  %s157, 128, %s160, %s146
        $region24: #{tpu_custom_call.1} parent=19 // pred_fallthru
          _
      $region20: #{tpu_custom_call.1} parent=5 // pred_fallthru
        _
      %p163 = scmp.le.s32.totalorder 1, %s15
      %p164 = scmp.lt.s32.totalorder %s15, 3
      %p165 = pnand %p163, %p164
      %p166 = pneg %p165
      // Predicated region
      $region25: #{tpu_custom_call.1} parent=5 // pred_check
        _
      $region26: #{tpu_custom_call.1} parent=5 // pred_check_branch
        %168 = sbr.rel (%p165) target = $region28
      $region27: #{tpu_custom_call.1} parent=5 // pred_region
        %s169 = ssub.s32 %s15, 1
        %s170 = sand.u32 %s42, 1
        %s171 = scalar_lea.sflag [#allocation3], %s170
        %s172 = sand.u32 %s42, 1
        %s173 = smul.addr %s172, 8
        %s174 = scalar_lea.vmem [#allocation2], %s173
        // Predicated region
        $region29: #{tpu_custom_call.1} parent=27 // pred_check
          %p175 = pneg %p55
        $region30: #{tpu_custom_call.1} parent=27 // pred_check_branch
          %177 = sbr.rel (%p175) target = $region32
        $region31: #{tpu_custom_call.1} parent=27 // pred_region
          %178 = dma.done %s171, 128
        $region32: #{tpu_custom_call.1} parent=27 // pred_fallthru
          _
        // Predicated region
        $region33: #{tpu_custom_call.1} parent=27 // pred_check
          %p179 = pneg %p81
        $region34: #{tpu_custom_call.1} parent=27 // pred_check_branch
          %181 = sbr.rel (%p179) target = $region36
        $region35: #{tpu_custom_call.1} parent=27 // pred_region
          %182 = dma.done [#allocation6], 128
        $region36: #{tpu_custom_call.1} parent=27 // pred_fallthru
          _
        %s183 = sand.u32 %s42, 1
        %s184 = scalar_lea.sflag [#allocation3], %s183
        %s185 = sand.u32 %s42, 1
        %s186 = smul.addr %s185, 8
        %s187 = scalar_lea.vmem [#allocation2], %s186
        %p188 = pneg %p55
        %p189 = pneg %p52
        %p190 = pneg %p81
        %p191 = pneg %p78
        %p192 = pneg %p109
        %p193 = pneg %p106
        %s194 = sand.u32 %s96, 1
        %s195 = scalar_lea.sflag [#allocation4], %s194
        %s196 = sand.u32 %s96, 1
        %s197 = smul.addr %s196, 8
        %s198 = scalar_lea.vmem [#allocation7], %s197
        %v199 = vld [vmem:[%s174] sm:$0xff]
        %v200 = vld [vmem:[#allocation5] sm:$0xff]
        %v201 = vadd.f32 %v199, %v200
        %202 = vst [vmem:[%s198] sm:$0xff] %v201
        %s203 = sand.u32 %s96, 1
        %s204 = scalar_lea.sflag [#allocation4], %s203
        %s205 = sand.u32 %s96, 1
        %s206 = smul.addr %s205, 8
        %s207 = scalar_lea.vmem [#allocation7], %s206
        // Predicated region
        $region37: #{tpu_custom_call.1} parent=27 // pred_check
          %p208 = pneg %p106
        $region38: #{tpu_custom_call.1} parent=27 // pred_check_branch
          %210 = sbr.rel (%p208) target = $region40
        $region39: #{tpu_custom_call.1} parent=27 // pred_region
          %s212 = ssub.s32 128, 128
          %213 = vsyncadd %s204, %s212
          %s214 = smul.addr %s24, 8
          %s215 = smul.addr %s25, 8
          %s216 = sadd.s32 %s214, %s215
          %s217 = smul.addr %s216, 16
          %s218 = scalar_lea.hbm %s2, %s217
          %s220 = sshll.u32 %s207, 4
          %s221 = int_to_ptr.vmem [resolvable:$true] %s220
          %223 = dma.vmem_to_hbm [thread:$0]  %s221, 128, %s218, %s204
        $region40: #{tpu_custom_call.1} parent=27 // pred_fallthru
          _
      $region28: #{tpu_custom_call.1} parent=5 // pred_fallthru
        _
      %p224 = scmp.le.s32.totalorder 2, %s15
      // Predicated region
      $region41: #{tpu_custom_call.1} parent=5 // pred_check
        %p225 = pneg %p224
      $region42: #{tpu_custom_call.1} parent=5 // pred_check_branch
        %227 = sbr.rel (%p225) target = $region44
      $region43: #{tpu_custom_call.1} parent=5 // pred_region
        %s228 = ssub.s32 %s15, 2
        // Predicated region
        $region45: #{tpu_custom_call.1} parent=43 // pred_check
          %p229 = pneg %p112
        $region46: #{tpu_custom_call.1} parent=43 // pred_check_branch
          %231 = sbr.rel (%p229) target = $region48
        $region47: #{tpu_custom_call.1} parent=43 // pred_region
          %s232 = sand.u32 %s97, 1
          %s233 = scalar_lea.sflag [#allocation4], %s232
          %s234 = sand.u32 %s97, 1
          %s235 = smul.addr %s234, 8
          %s236 = scalar_lea.vmem [#allocation7], %s235
          %237 = dma.done %s233, 128
        $region48: #{tpu_custom_call.1} parent=43 // pred_fallthru
          _
      $region44: #{tpu_custom_call.1} parent=5 // pred_fallthru
        _
    $region6: #{tpu_custom_call.1} parent=1 // loop_footer
      %s19 = sadd.s32 1, %s15
    $region7: #{tpu_custom_call.1} parent=1 // loop_footer_branch
      %14 = sbr.rel target = $region3
    $region8: #{tpu_custom_call.1} parent=1 // loop_exit
      _
    %238 = vsyncpa [#allocation3], 1
    %s239 = scalar_lea.sflag [#allocation3], 1
    %240 = vsyncpa %s239, 1
    %241 = vsyncpa [#allocation6], 1
    %242 = vsyncpa [#allocation4], 1
    %s243 = scalar_lea.sflag [#allocation4], 1
    %244 = vsyncpa %s243, 1

</llo_original>
